<compile_context>
chip_gen: v5e
topology: v5e:2x2
jax: 0.10.0
libtpu: 0.0.40
codegen_flags: <defaults>
</compile_context>

<pallas_src>
import math

import jax
import jax.numpy as jnp
from jax.experimental import pallas as pl
from jax.experimental.pallas import tpu as pltpu

# ---- small synthetic config (consistent with the module's shape logic) ----
BATCH = 2
SEQ = 8
HIDDEN = 32
NUM_HEADS = 2
HEAD_DIM = HIDDEN // NUM_HEADS        # 16


def _make_kernel(num_heads, head_dim):
    half = head_dim // 2
    three_d = 3 * head_dim

    def kernel(x_ref, wqkv_ref, bqkv_ref, wo_ref, bo_ref, rope_ref,
               out_ref, qkv_ref):
        n = pl.program_id(1)                                   # head index

        # ---- stage fused QKV once per batch step (head 0) ------------------
        # One lane-dense (S, H) @ (H, NH*3D) bf16 MXU matmul, f32 accumulate.
        @pl.when(n == 0)
        def _():
            x = x_ref[0].astype(jnp.bfloat16)                  # (S, H)
            qkv = jnp.dot(x, wqkv_ref[...],
                          preferred_element_type=jnp.float32)  # (S, NH*3D) f32
            qkv = qkv + bqkv_ref[...]                          # f32 bias row
            for h in range(num_heads):                         # static unroll
                qkv_ref[h] = qkv[:, h * three_d:(h + 1) * three_d]

        # ---- per-head attention --------------------------------------------
        qkv_h = qkv_ref[n]                                     # (S, 3D) f32
        q = qkv_h[:, 0:head_dim]           # already scaled + half-split layout
        k = qkv_h[:, head_dim:2 * head_dim]
        v = qkv_h[:, 2 * head_dim:3 * head_dim]

        # rotate-half RoPE: x*[cos|cos] + roll(x, D/2)*[-sin|sin]  (f32, XLU roll)
        cos = rope_ref[0]                                      # (S, D)
        sin = rope_ref[1]                                      # (S, D)
        qr = q * cos + pltpu.roll(q, shift=half, axis=1) * sin
        kr = k * cos + pltpu.roll(k, shift=half, axis=1) * sin

        # scaled dot-product attention; 1/sqrt(D) already folded into q weights
        s = jnp.einsum("qd,kd->qk",
                       qr.astype(jnp.bfloat16), kr.astype(jnp.bfloat16),
                       preferred_element_type=jnp.float32)     # (S, S) f32
        s = s - jnp.max(s, axis=-1, keepdims=True)
        p = jnp.exp(s)
        p = p * pl.reciprocal(jnp.sum(p, axis=-1, keepdims=True), approx=True)
        ctx = jnp.dot(p.astype(jnp.bfloat16), v.astype(jnp.bfloat16),
                      preferred_element_type=jnp.float32)      # (S, D) f32

        # ---- per-head o_proj partial, accumulated in the resident out block -
        part = jnp.dot(ctx.astype(jnp.bfloat16), wo_ref[0],
                       preferred_element_type=jnp.float32)     # (S, H) f32

        @pl.when(n == 0)
        def _():
            out_ref[0] = part + bo_ref[...]

        @pl.when(n > 0)
        def _():
            out_ref[0] = out_ref[0] + part

    return kernel


def _prepare_params(params):
    """Offline weight prep: fold the interleaved->half-split RoPE permutation
    and the 1/sqrt(head_dim) scale into the q columns, fuse q/k/v head-major
    into one (H, NH*3D) weight, and cast MXU weights to bf16."""
    H, NH, D = HIDDEN, NUM_HEADS, HEAD_DIM
    scale = 1.0 / math.sqrt(D)
    wqkv, bqkv = params["wqkv"], params["bqkv"]        # (3H, H), (3H,)
    # de-interleave within a head: [0,2,4,...,1,3,5,...]
    perm = jnp.concatenate([jnp.arange(0, D, 2), jnp.arange(1, D, 2)])

    wq = wqkv[0:H].reshape(NH, D, H)[:, perm, :] * scale
    wk = wqkv[H:2 * H].reshape(NH, D, H)[:, perm, :]
    wv = wqkv[2 * H:3 * H].reshape(NH, D, H)
    wqkv_fused = (jnp.concatenate([wq, wk, wv], axis=1)        # (NH, 3D, H)
                  .reshape(NH * 3 * D, H).T                    # (H, NH*3D)
                  .astype(jnp.bfloat16))

    bq = bqkv[0:H].reshape(NH, D)[:, perm] * scale
    bk = bqkv[H:2 * H].reshape(NH, D)[:, perm]
    bv = bqkv[2 * H:3 * H].reshape(NH, D)
    bqkv_fused = jnp.concatenate([bq, bk, bv], axis=1).reshape(1, NH * 3 * D)

    wo3 = params["wo"].T.reshape(NH, D, H).astype(jnp.bfloat16)  # per-head rows
    bo = params["bo"].reshape(1, H)
    return wqkv_fused, bqkv_fused, wo3, bo


def llama4_vision_attention(hidden_states, freqs_ci, params):
    B, S, H = hidden_states.shape
    NH, D = NUM_HEADS, HEAD_DIM
    wqkv_f, bqkv_f, wo3, bo = _prepare_params(params)

    # packed rotate-half tables: rope[0] = [cos|cos], rope[1] = [-sin|sin]
    cos = freqs_ci[..., 0]                                     # (S, D/2)
    sin = freqs_ci[..., 1]
    rope = jnp.stack([jnp.concatenate([cos, cos], axis=-1),
                      jnp.concatenate([-sin, sin], axis=-1)], axis=0)  # (2,S,D)

    kernel = _make_kernel(NH, D)

    return pl.pallas_call(
        kernel,
        out_shape=jax.ShapeDtypeStruct((B, S, H), jnp.float32),
        grid_spec=pltpu.PrefetchScalarGridSpec(
            num_scalar_prefetch=0,
            grid=(B, NH),
            in_specs=[
                pl.BlockSpec((1, S, H), lambda b, n: (b, 0, 0)),      # x
                pl.BlockSpec((H, NH * 3 * D), lambda b, n: (0, 0)),   # fused Wqkv (bf16)
                pl.BlockSpec((1, NH * 3 * D), lambda b, n: (0, 0)),   # fused bqkv (f32)
                pl.BlockSpec((1, D, H), lambda b, n: (n, 0, 0)),      # per-head Wo (bf16)
                pl.BlockSpec((1, H), lambda b, n: (0, 0)),            # bo
                pl.BlockSpec((2, S, D), lambda b, n: (0, 0, 0)),      # rope tables
            ],
            out_specs=pl.BlockSpec((1, S, H), lambda b, n: (b, 0, 0)),
            scratch_shapes=[pltpu.VMEM((NH, S, 3 * D), jnp.float32)],
        ),
        compiler_params=pltpu.CompilerParams(
            dimension_semantics=("parallel", "arbitrary")),
    )(hidden_states, wqkv_f, bqkv_f, wo3, bo, rope)


# --------------------------- pure-JAX reference ---------------------------
def reference_forward(x, freqs_ci, params):
    B, S, H = x.shape
    qkv = x @ params["wqkv"].T + params["bqkv"]
    q, k, v = jnp.split(qkv, 3, axis=-1)
    q = q.reshape(B, S, NUM_HEADS, HEAD_DIM)
    k = k.reshape(B, S, NUM_HEADS, HEAD_DIM)
    v = v.reshape(B, S, NUM_HEADS, HEAD_DIM)

    cos = freqs_ci[..., 0][None, :, None, :]            # (1, S, 1, D/2)
    sin = freqs_ci[..., 1][None, :, None, :]
    qr = q.reshape(B, S, NUM_HEADS, HEAD_DIM // 2, 2)
    kr = k.reshape(B, S, NUM_HEADS, HEAD_DIM // 2, 2)
    xq, yq = qr[..., 0], qr[..., 1]
    xk, yk = kr[..., 0], kr[..., 1]
    q = jnp.stack([xq * cos - yq * sin, xq * sin + yq * cos], -1).reshape(
        B, S, NUM_HEADS, HEAD_DIM)
    k = jnp.stack([xk * cos - yk * sin, xk * sin + yk * cos], -1).reshape(
        B, S, NUM_HEADS, HEAD_DIM)

    qt = q.transpose(0, 2, 1, 3)
    kt = k.transpose(0, 2, 1, 3)
    vt = v.transpose(0, 2, 1, 3)
    scores = jnp.einsum("bhqd,bhkd->bhqk", qt, kt) / math.sqrt(HEAD_DIM)
    probs = jax.nn.softmax(scores, axis=-1)
    attn = jnp.einsum("bhqk,bhkd->bhqd", probs, vt)
    attn = attn.transpose(0, 2, 1, 3).reshape(B, S, H)
    return attn @ params["wo"].T + params["bo"]


def init_params(key):
    ks = jax.random.split(key, 4)
    n = lambda k, shape, s: s * jax.random.normal(k, shape, jnp.float32)
    return {
        "wqkv": n(ks[0], (3 * HIDDEN, HIDDEN), 0.05),
        "bqkv": n(ks[1], (3 * HIDDEN,), 0.05),
        "wo": n(ks[2], (HIDDEN, HIDDEN), 0.05),
        "bo": n(ks[3], (HIDDEN,), 0.05),
    }


if __name__ == "__main__":
    root = jax.random.PRNGKey(0)
    k_x, k_p = jax.random.split(root)

    x = jax.random.normal(k_x, (BATCH, SEQ, HIDDEN), jnp.float32)

    # rotary table: (S, head_dim//2, 2) with cos / sin stacked on last axis
    pos = jnp.arange(SEQ, dtype=jnp.float32)
    inv_freq = 1.0 / (10000.0 ** (
        jnp.arange(0, HEAD_DIM // 2, dtype=jnp.float32) * 2.0 / HEAD_DIM))
    angles = pos[:, None] * inv_freq[None, :]
    freqs_ci = jnp.stack([jnp.cos(angles), jnp.sin(angles)], axis=-1)

    params = init_params(k_p)

    out = llama4_vision_attention(x, freqs_ci, params)
    out = jax.block_until_ready(out)

    ref = reference_forward(x, freqs_ci, params)
    assert out.shape == (BATCH, SEQ, HIDDEN)
    # tolerance accounts for bf16 MXU operands and the approx EUP reciprocal
    if not bool(jnp.allclose(out, ref, atol=1e-2, rtol=1e-2)):
        raise AssertionError("Pallas kernel output does not match JAX reference")

    print("KERNEL_OK")
</pallas_src>

<mosaic_0001>
module attributes {stable_mosaic.version = 11 : i64} {
  func.func @kernel(%arg0: i32, %arg1: i32, %arg2: memref<1x8x32xf32, #tpu.memory_space<vmem>>, %arg3: memref<32x96xbf16, #tpu.memory_space<vmem>>, %arg4: memref<1x96xf32, #tpu.memory_space<vmem>>, %arg5: memref<1x16x32xbf16, #tpu.memory_space<vmem>>, %arg6: memref<1x32xf32, #tpu.memory_space<vmem>>, %arg7: memref<2x8x16xf32, #tpu.memory_space<vmem>>, %arg8: memref<1x8x32xf32, #tpu.memory_space<vmem>>, %arg9: memref<2x8x48xf32, #tpu.memory_space<vmem>>) attributes {dimension_semantics = [#tpu.dimension_semantics<parallel>, #tpu.dimension_semantics<arbitrary>], iteration_bounds = array<i64: 2, 2>, scalar_prefetch = 0 : i64, scratch_operands = 1 : i64, tpu.core_type = #tpu.core_type<tc>, window_params = [{transform_indices = @transform_0, window_bounds = array<i64: 1, 8, 32>}, {pipeline_mode = #tpu.pipeline_mode<synchronous>, transform_indices = @transform_1, window_bounds = array<i64: 32, 96>}, {pipeline_mode = #tpu.pipeline_mode<synchronous>, transform_indices = @transform_2, window_bounds = array<i64: 1, 96>}, {transform_indices = @transform_3, window_bounds = array<i64: 1, 16, 32>}, {pipeline_mode = #tpu.pipeline_mode<synchronous>, transform_indices = @transform_4, window_bounds = array<i64: 1, 32>}, {pipeline_mode = #tpu.pipeline_mode<synchronous>, transform_indices = @transform_5, window_bounds = array<i64: 2, 8, 16>}, {transform_indices = @transform_6, window_bounds = array<i64: 1, 8, 32>}]} {
    %c0_i32 = arith.constant 0 : i32
    %0 = arith.cmpi eq, %arg1, %c0_i32 : i32
    %1 = arith.extui %0 : i1 to i32
    %c0_i32_0 = arith.constant 0 : i32
    %2 = arith.cmpi ne, %1, %c0_i32_0 : i32
    scf.if %2 {
      %c0_19 = arith.constant 0 : index
      %c0_20 = arith.constant 0 : index
      %c0_21 = arith.constant 0 : index
      %47 = vector.load %arg2[%c0_19, %c0_20, %c0_21] : memref<1x8x32xf32, #tpu.memory_space<vmem>>, vector<1x8x32xf32>
      %48 = vector.shape_cast %47 : vector<1x8x32xf32> to vector<8x32xf32>
      %49 = arith.truncf %48 : vector<8x32xf32> to vector<8x32xbf16>
      %c0_22 = arith.constant 0 : index
      %c0_23 = arith.constant 0 : index
      %50 = vector.load %arg3[%c0_22, %c0_23] : memref<32x96xbf16, #tpu.memory_space<vmem>>, vector<32x96xbf16>
      %cst_24 = arith.constant dense<0.000000e+00> : vector<8x96xf32>
      %51 = tpu.matmul %49, %50, %cst_24 {dimension_numbers = #tpu.dot_dimension_numbers<[1], [0], [0], [1], [0, 0, 1, 1], [], []>} : vector<8x32xbf16>, vector<32x96xbf16>, vector<8x96xf32> -> vector<8x96xf32>
      %c0_25 = arith.constant 0 : index
      %c0_26 = arith.constant 0 : index
      %52 = vector.load %arg4[%c0_25, %c0_26] : memref<1x96xf32, #tpu.memory_space<vmem>>, vector<1x96xf32>
      %53 = vector.broadcast %52 : vector<1x96xf32> to vector<8x96xf32>
      %54 = arith.addf %51, %53 : vector<8x96xf32>
      %55 = vector.extract_strided_slice %54 {offsets = [0, 0], sizes = [8, 48], strides = [1, 1]} : vector<8x96xf32> to vector<8x48xf32>
      %c0_27 = arith.constant 0 : index
      %c0_28 = arith.constant 0 : index
      %c0_29 = arith.constant 0 : index
      %56 = vector.load %arg9[%c0_27, %c0_28, %c0_29] : memref<2x8x48xf32, #tpu.memory_space<vmem>>, vector<1x8x48xf32>
      %57 = vector.shape_cast %56 : vector<1x8x48xf32> to vector<8x48xf32>
      %58 = vector.shape_cast %55 : vector<8x48xf32> to vector<1x8x48xf32>
      tpu.vector_store %arg9[%c0_27, %c0_28, %c0_29], %58 {strides = array<i32>} : memref<2x8x48xf32, #tpu.memory_space<vmem>>, vector<1x8x48xf32>,
      %59 = vector.extract_strided_slice %54 {offsets = [0, 48], sizes = [8, 48], strides = [1, 1]} : vector<8x96xf32> to vector<8x48xf32>
      %c1_30 = arith.constant 1 : index
      %c0_31 = arith.constant 0 : index
      %c0_32 = arith.constant 0 : index
      %60 = vector.load %arg9[%c1_30, %c0_31, %c0_32] : memref<2x8x48xf32, #tpu.memory_space<vmem>>, vector<1x8x48xf32>
      %61 = vector.shape_cast %60 : vector<1x8x48xf32> to vector<8x48xf32>
      %62 = vector.shape_cast %59 : vector<8x48xf32> to vector<1x8x48xf32>
      tpu.vector_store %arg9[%c1_30, %c0_31, %c0_32], %62 {strides = array<i32>} : memref<2x8x48xf32, #tpu.memory_space<vmem>>, vector<1x8x48xf32>,
    } else {
    }
    %3 = arith.index_cast %arg1 : i32 to index
    %c0 = arith.constant 0 : index
    %c0_1 = arith.constant 0 : index
    %4 = vector.load %arg9[%3, %c0, %c0_1] : memref<2x8x48xf32, #tpu.memory_space<vmem>>, vector<1x8x48xf32>
    %5 = vector.shape_cast %4 : vector<1x8x48xf32> to vector<8x48xf32>
    %6 = vector.extract_strided_slice %5 {offsets = [0, 0], sizes = [8, 16], strides = [1, 1]} : vector<8x48xf32> to vector<8x16xf32>
    %7 = vector.extract_strided_slice %5 {offsets = [0, 16], sizes = [8, 16], strides = [1, 1]} : vector<8x48xf32> to vector<8x16xf32>
    %8 = vector.extract_strided_slice %5 {offsets = [0, 32], sizes = [8, 16], strides = [1, 1]} : vector<8x48xf32> to vector<8x16xf32>
    %c0_2 = arith.constant 0 : index
    %c0_3 = arith.constant 0 : index
    %c0_4 = arith.constant 0 : index
    %9 = vector.load %arg7[%c0_2, %c0_3, %c0_4] : memref<2x8x16xf32, #tpu.memory_space<vmem>>, vector<1x8x16xf32>
    %10 = vector.shape_cast %9 : vector<1x8x16xf32> to vector<8x16xf32>
    %c1 = arith.constant 1 : index
    %c0_5 = arith.constant 0 : index
    %c0_6 = arith.constant 0 : index
    %11 = vector.load %arg7[%c1, %c0_5, %c0_6] : memref<2x8x16xf32, #tpu.memory_space<vmem>>, vector<1x8x16xf32>
    %12 = vector.shape_cast %11 : vector<1x8x16xf32> to vector<8x16xf32>
    %13 = arith.mulf %6, %10 : vector<8x16xf32>
    %c8_i32 = arith.constant 8 : i32
    %14 = tpu.dynamic_rotate %6 by %c8_i32 dim 1 : vector<8x16xf32>, i32 -> vector<8x16xf32>
    %15 = arith.mulf %14, %12 : vector<8x16xf32>
    %16 = arith.addf %13, %15 : vector<8x16xf32>
    %17 = arith.mulf %7, %10 : vector<8x16xf32>
    %c8_i32_7 = arith.constant 8 : i32
    %18 = tpu.dynamic_rotate %7 by %c8_i32_7 dim 1 : vector<8x16xf32>, i32 -> vector<8x16xf32>
    %19 = arith.mulf %18, %12 : vector<8x16xf32>
    %20 = arith.addf %17, %19 : vector<8x16xf32>
    %21 = arith.truncf %16 : vector<8x16xf32> to vector<8x16xbf16>
    %22 = arith.truncf %20 : vector<8x16xf32> to vector<8x16xbf16>
    "tpu.trace_start"() <{level = 10 : i32, message = "qd,kd->qk"}> : () -> ()
    %cst = arith.constant dense<0.000000e+00> : vector<8x8xf32>
    %23 = tpu.matmul %21, %22, %cst {dimension_numbers = #tpu.dot_dimension_numbers<[1], [1], [0], [0], [0, 0, 1, 0], [], []>} : vector<8x16xbf16>, vector<8x16xbf16>, vector<8x8xf32> -> vector<8x8xf32>
    "tpu.trace_stop"() : () -> ()
    %cst_8 = arith.constant dense<0xFF800000> : vector<8xf32>
    %24 = vector.multi_reduction <maximumf>, %23, %cst_8 [1] : vector<8x8xf32> to vector<8xf32>
    %25 = vector.shape_cast %24 : vector<8xf32> to vector<8x1xf32>
    %26 = vector.broadcast %25 : vector<8x1xf32> to vector<8x8xf32>
    %27 = arith.subf %23, %26 : vector<8x8xf32>
    %28 = math.exp %27 : vector<8x8xf32>
    %cst_9 = arith.constant dense<0.000000e+00> : vector<8xf32>
    %29 = vector.multi_reduction <add>, %28, %cst_9 [1] : vector<8x8xf32> to vector<8xf32>
    %30 = vector.shape_cast %29 : vector<8xf32> to vector<8x1xf32>
    %31 = tpu.reciprocal %30 {approx = true} : vector<8x1xf32> -> vector<8x1xf32>
    %32 = vector.broadcast %31 : vector<8x1xf32> to vector<8x8xf32>
    %33 = arith.mulf %28, %32 : vector<8x8xf32>
    %34 = arith.truncf %33 : vector<8x8xf32> to vector<8x8xbf16>
    %35 = arith.truncf %8 : vector<8x16xf32> to vector<8x16xbf16>
    %cst_10 = arith.constant dense<0.000000e+00> : vector<8x16xf32>
    %36 = tpu.matmul %34, %35, %cst_10 {dimension_numbers = #tpu.dot_dimension_numbers<[1], [0], [0], [1], [0, 0, 1, 1], [], []>} : vector<8x8xbf16>, vector<8x16xbf16>, vector<8x16xf32> -> vector<8x16xf32>
    %37 = arith.truncf %36 : vector<8x16xf32> to vector<8x16xbf16>
    %c0_11 = arith.constant 0 : index
    %c0_12 = arith.constant 0 : index
    %c0_13 = arith.constant 0 : index
    %38 = vector.load %arg5[%c0_11, %c0_12, %c0_13] : memref<1x16x32xbf16, #tpu.memory_space<vmem>>, vector<1x16x32xbf16>
    %39 = vector.shape_cast %38 : vector<1x16x32xbf16> to vector<16x32xbf16>
    %cst_14 = arith.constant dense<0.000000e+00> : vector<8x32xf32>
    %40 = tpu.matmul %37, %39, %cst_14 {dimension_numbers = #tpu.dot_dimension_numbers<[1], [0], [0], [1], [0, 0, 1, 1], [], []>} : vector<8x16xbf16>, vector<16x32xbf16>, vector<8x32xf32> -> vector<8x32xf32>
    %c0_i32_15 = arith.constant 0 : i32
    %41 = arith.cmpi eq, %arg1, %c0_i32_15 : i32
    %42 = arith.extui %41 : i1 to i32
    %c0_i32_16 = arith.constant 0 : i32
    %43 = arith.cmpi ne, %42, %c0_i32_16 : i32
    scf.if %43 {
      %c0_19 = arith.constant 0 : index
      %c0_20 = arith.constant 0 : index
      %47 = vector.load %arg6[%c0_19, %c0_20] : memref<1x32xf32, #tpu.memory_space<vmem>>, vector<1x32xf32>
      %48 = vector.broadcast %47 : vector<1x32xf32> to vector<8x32xf32>
      %49 = arith.addf %40, %48 : vector<8x32xf32>
      %c0_21 = arith.constant 0 : index
      %c0_22 = arith.constant 0 : index
      %c0_23 = arith.constant 0 : index
      %50 = vector.load %arg8[%c0_21, %c0_22, %c0_23] : memref<1x8x32xf32, #tpu.memory_space<vmem>>, vector<1x8x32xf32>
      %51 = vector.shape_cast %50 : vector<1x8x32xf32> to vector<8x32xf32>
      %52 = vector.shape_cast %49 : vector<8x32xf32> to vector<1x8x32xf32>
      tpu.vector_store %arg8[%c0_21, %c0_22, %c0_23], %52 {strides = array<i32>} : memref<1x8x32xf32, #tpu.memory_space<vmem>>, vector<1x8x32xf32>,
    } else {
    }
    %c0_i32_17 = arith.constant 0 : i32
    %44 = arith.cmpi sgt, %arg1, %c0_i32_17 : i32
    %45 = arith.extui %44 : i1 to i32
    %c0_i32_18 = arith.constant 0 : i32
    %46 = arith.cmpi ne, %45, %c0_i32_18 : i32
    scf.if %46 {
      %c0_19 = arith.constant 0 : index
      %c0_20 = arith.constant 0 : index
      %c0_21 = arith.constant 0 : index
      %47 = vector.load %arg8[%c0_19, %c0_20, %c0_21] : memref<1x8x32xf32, #tpu.memory_space<vmem>>, vector<1x8x32xf32>
      %48 = vector.shape_cast %47 : vector<1x8x32xf32> to vector<8x32xf32>
      %49 = arith.addf %48, %40 : vector<8x32xf32>
      %c0_22 = arith.constant 0 : index
      %c0_23 = arith.constant 0 : index
      %c0_24 = arith.constant 0 : index
      %50 = vector.load %arg8[%c0_22, %c0_23, %c0_24] : memref<1x8x32xf32, #tpu.memory_space<vmem>>, vector<1x8x32xf32>
      %51 = vector.shape_cast %50 : vector<1x8x32xf32> to vector<8x32xf32>
      %52 = vector.shape_cast %49 : vector<8x32xf32> to vector<1x8x32xf32>
      tpu.vector_store %arg8[%c0_22, %c0_23, %c0_24], %52 {strides = array<i32>} : memref<1x8x32xf32, #tpu.memory_space<vmem>>, vector<1x8x32xf32>,
    } else {
    }
    return
  }
  func.func @transform_0(%arg0: i32, %arg1: i32) -> (i32, i32, i32) {
    %c0_i32 = arith.constant 0 : i32
    %c0_i32_0 = arith.constant 0 : i32
    %c0_i32_1 = arith.constant 0 : i32
    return %arg0, %c0_i32, %c0_i32_0 : i32, i32, i32
  }
  func.func @transform_1(%arg0: i32, %arg1: i32) -> (i32, i32) {
    %c0_i32 = arith.constant 0 : i32
    %c0_i32_0 = arith.constant 0 : i32
    %c0_i32_1 = arith.constant 0 : i32
    return %c0_i32, %c0_i32_0 : i32, i32
  }
  func.func @transform_2(%arg0: i32, %arg1: i32) -> (i32, i32) {
    %c0_i32 = arith.constant 0 : i32
    %c0_i32_0 = arith.constant 0 : i32
    %c0_i32_1 = arith.constant 0 : i32
    return %c0_i32, %c0_i32_0 : i32, i32
  }
  func.func @transform_3(%arg0: i32, %arg1: i32) -> (i32, i32, i32) {
    %c0_i32 = arith.constant 0 : i32
    %c0_i32_0 = arith.constant 0 : i32
    %c0_i32_1 = arith.constant 0 : i32
    return %arg1, %c0_i32, %c0_i32_0 : i32, i32, i32
  }
  func.func @transform_4(%arg0: i32, %arg1: i32) -> (i32, i32) {
    %c0_i32 = arith.constant 0 : i32
    %c0_i32_0 = arith.constant 0 : i32
    %c0_i32_1 = arith.constant 0 : i32
    return %c0_i32, %c0_i32_0 : i32, i32
  }
  func.func @transform_5(%arg0: i32, %arg1: i32) -> (i32, i32, i32) {
    %c0_i32 = arith.constant 0 : i32
    %c0_i32_0 = arith.constant 0 : i32
    %c0_i32_1 = arith.constant 0 : i32
    %c0_i32_2 = arith.constant 0 : i32
    return %c0_i32, %c0_i32_0, %c0_i32_1 : i32, i32, i32
  }
  func.func @transform_6(%arg0: i32, %arg1: i32) -> (i32, i32, i32) {
    %c0_i32 = arith.constant 0 : i32
    %c0_i32_0 = arith.constant 0 : i32
    %c0_i32_1 = arith.constant 0 : i32
    return %arg0, %c0_i32, %c0_i32_0 : i32, i32, i32
  }
}

</mosaic_0001>

<llo_original>
// kernel: tpu_custom_call.1
$region0: #{tpu_custom_call.1}
  #allocation0 [shape = 'u32[]', space=smem, size = 0x4, offset = 0x4, fixed_abs, tag = 'smem constant byte address 0x4 - core index']
  #allocation1 [shape = 'u32[72,128]{1,0:T(1,128)}', space=vmem, size = 0x9000, scoped, tag = 'internal scratch']
  #allocation2 [shape = 'f32[2,8,48]{2,1,0:T(8,128)}', space=vmem, size = 0x2000, scoped, tag = 'scratch operand']
  %s0 = inlined_call_operand.hbm [shape: f32[2,8,32], index: 0, kind: input, shape index: {}]
  %s1 = inlined_call_operand.hbm [shape: bf16[32,96], index: 1, kind: input, shape index: {}]
  %s2 = inlined_call_operand.vmem [shape: f32[1,96], index: 2, kind: input, shape index: {}]
  %s3 = inlined_call_operand.hbm [shape: bf16[2,16,32], index: 3, kind: input, shape index: {}]
  %s4 = inlined_call_operand.vmem [shape: f32[1,32], index: 4, kind: input, shape index: {}]
  %s5 = inlined_call_operand.hbm [shape: f32[2,8,16], index: 5, kind: input, shape index: {}]
  %s6 = inlined_call_operand.hbm [shape: f32[2,8,32], index: 6, kind: output, shape index: {}]
  %s7 = sld [smem:[#allocation0]]
  $region85: #{tpu_custom_call.1} parent=0
    _
  %s9 = ssub.s32 1, %s7
  %s10 = scalar_select 0, %s9, %s7
  $region1: #{tpu_custom_call.1} parent=0
    #allocation3 [shape = 'u8[8192]{0}', space=vmem, size = 0x2000, scoped, tag = 'input window, operand 0']
    #allocation4 [shape = 's32[2]{0}', space=sflag, size = 0x8, scoped, tag = 'scoped memory for tpu_custom_call.1']
    #allocation5 [shape = 's32[2]{0}', space=sflag, size = 0x8, scoped, tag = 'scoped memory for tpu_custom_call.1']
    #allocation6 [shape = 'u8[8192]{0}', space=vmem, size = 0x2000, scoped, tag = 'input window, operand 1, single buffered']
    #allocation7 [shape = 's32[1]{0}', space=sflag, size = 0x4, scoped, tag = 'scoped memory for tpu_custom_call.1']
    #allocation8 [shape = 'u8[8192]{0}', space=vmem, size = 0x2000, scoped, tag = 'input window, operand 3']
    #allocation9 [shape = 'u8[8192]{0}', space=vmem, size = 0x2000, scoped, tag = 'input window, operand 5, single buffered']
    #allocation10 [shape = 'u8[8192]{0}', space=vmem, size = 0x2000, scoped, tag = 'output window, operand 0']
    %11 = vsyncpa [#allocation4], 0
    %s12 = scalar_lea.sflag [#allocation4], 1
    %13 = vsyncpa %s12, 0
    %14 = vsyncpa [#allocation7], 0
    %15 = vsyncpa [#allocation5], 0
    %s16 = scalar_lea.sflag [#allocation5], 1
    %17 = vsyncpa %s16, 0
    loop: start=0, step=1, limit=6
    $region2: #{tpu_custom_call.1} parent=1 // loop_pre_header
      _
    $region3: #{tpu_custom_call.1} parent=1 // loop_header
      %s19 = sphi 0, %s23
      %p20 = scmp.ge.s32.totalorder %s19, 6
      %s26 = sphi 0, %s38
      %s27 = sphi 0, %s34
      %s28 = sphi 0, %s26
      %s29 = sphi 0, %s27
      %s30 = sphi 0, %s28
      %s31 = sphi 0, %s29
      %s41 = sphi 0, %s43
      %s44 = sphi 0, %s41
      %s45 = sphi 0, %s44
      %s61 = sphi 0, %s45
      %s65 = sphi 0, %s65
      %s67 = sphi 0, %s65
      %s68 = sphi 0, %s67
      %s82 = sphi 0, %s68
      %s86 = sphi 0, %s86
      %s88 = sphi 0, %s86
      %s89 = sphi 0, %s88
      %s103 = sphi 0, %s89
      %s109 = sphi 0, %s111
      %s112 = sphi 0, %s109
      %s113 = sphi 0, %s112
      %s129 = sphi 0, %s113
      %s133 = sphi 0, %s133
      %s135 = sphi 0, %s133
      %s136 = sphi 0, %s135
      %s150 = sphi 0, %s136
      %s154 = sphi 0, %s154
      %s156 = sphi 0, %s154
      %s157 = sphi 0, %s156
      %s171 = sphi 0, %s157
      %s177 = sphi 0, %s179
      %s180 = sphi 0, %s177
      %s181 = sphi 0, %s180
      %s197 = sphi 0, %s181
    $region4: #{tpu_custom_call.1} parent=1 // loop_header_branch
      %22 = sbr.rel (%p20) target = $region8
    $region5: #{tpu_custom_call.1} parent=1 // loop_body
      %s24 = ssub.s32 %s19, 1
      %s25 = ssub.s32 %s19, 2
      %s32 = sadd.s32 1, %s27
      %p33 = scmp.ge.s32.totalorder %s32, 2
      %s34 = scalar_select %p33, 0, %s32
      %s35 = sadd.s32 1, %s26
      %s36 = scalar_select %p33, %s35, %s26
      %p37 = scmp.ge.s32.totalorder %s36, 2
      %s38 = scalar_select %p37, 0, %s36
      %s39 = ssub.s32 %s26, %s38
      %p40 = scmp.eq.s32.totalorder %s39, 0
      %s42 = sadd.s32 %s41, 1
      %s43 = scalar_select %p40, %s41, %s42
      %p46 = pneg %p40
      %p47 = scmp.eq.s32.totalorder %s19, 3
      %p48 = por %p46, %p47
      %p49 = scmp.ne.s32.totalorder %s41, %s44
      %p50 = scmp.eq.s32.totalorder %s19, 0
      %p51 = por %p49, %p50
      %p52 = scmp.ne.s32.totalorder %s41, %s44
      %p53 = scmp.eq.s32.totalorder %s24, 3
      %p54 = por %p52, %p53
      %p55 = scmp.ne.s32.totalorder %s44, %s45
      %p56 = scmp.eq.s32.totalorder %s24, 0
      %p57 = por %p55, %p56
      %p58 = scmp.ne.s32.totalorder %s44, %s45
      %p59 = scmp.eq.s32.totalorder %s25, 3
      %p60 = por %p58, %p59
      %p62 = scmp.ne.s32.totalorder %s45, %s61
      %p63 = scmp.eq.s32.totalorder %s25, 0
      %p64 = por %p62, %p63
      %s66 = sadd.s32 %s65, 1
      %p69 = scmp.eq.s32.totalorder %s19, 3
      %p70 = scmp.ne.s32.totalorder %s65, %s67
      %p71 = scmp.eq.s32.totalorder %s19, 0
      %p72 = por %p70, %p71
      %p73 = scmp.ne.s32.totalorder %s65, %s67
      %p74 = scmp.eq.s32.totalorder %s24, 3
      %p75 = por %p73, %p74
      %p76 = scmp.ne.s32.totalorder %s67, %s68
      %p77 = scmp.eq.s32.totalorder %s24, 0
      %p78 = por %p76, %p77
      %p79 = scmp.ne.s32.totalorder %s67, %s68
      %p80 = scmp.eq.s32.totalorder %s25, 3
      %p81 = por %p79, %p80
      %p83 = scmp.ne.s32.totalorder %s68, %s82
      %p84 = scmp.eq.s32.totalorder %s25, 0
      %p85 = por %p83, %p84
      %s87 = sadd.s32 %s86, 1
      %p90 = scmp.eq.s32.totalorder %s19, 3
      %p91 = scmp.ne.s32.totalorder %s86, %s88
      %p92 = scmp.eq.s32.totalorder %s19, 0
      %p93 = por %p91, %p92
      %p94 = scmp.ne.s32.totalorder %s86, %s88
      %p95 = scmp.eq.s32.totalorder %s24, 3
      %p96 = por %p94, %p95
      %p97 = scmp.ne.s32.totalorder %s88, %s89
      %p98 = scmp.eq.s32.totalorder %s24, 0
      %p99 = por %p97, %p98
      %p100 = scmp.ne.s32.totalorder %s88, %s89
      %p101 = scmp.eq.s32.totalorder %s25, 3
      %p102 = por %p100, %p101
      %p104 = scmp.ne.s32.totalorder %s89, %s103
      %p105 = scmp.eq.s32.totalorder %s25, 0
      %p106 = por %p104, %p105
      %s107 = ssub.s32 %s27, %s34
      %p108 = scmp.eq.s32.totalorder %s107, 0
      %s110 = sadd.s32 %s109, 1
      %s111 = scalar_select %p108, %s109, %s110
      %p114 = pneg %p108
      %p115 = scmp.eq.s32.totalorder %s19, 3
      %p116 = por %p114, %p115
      %p117 = scmp.ne.s32.totalorder %s109, %s112
      %p118 = scmp.eq.s32.totalorder %s19, 0
      %p119 = por %p117, %p118
      %p120 = scmp.ne.s32.totalorder %s109, %s112
      %p121 = scmp.eq.s32.totalorder %s24, 3
      %p122 = por %p120, %p121
      %p123 = scmp.ne.s32.totalorder %s112, %s113
      %p124 = scmp.eq.s32.totalorder %s24, 0
      %p125 = por %p123, %p124
      %p126 = scmp.ne.s32.totalorder %s112, %s113
      %p127 = scmp.eq.s32.totalorder %s25, 3
      %p128 = por %p126, %p127
      %p130 = scmp.ne.s32.totalorder %s113, %s129
      %p131 = scmp.eq.s32.totalorder %s25, 0
      %p132 = por %p130, %p131
      %s134 = sadd.s32 %s133, 1
      %p137 = scmp.eq.s32.totalorder %s19, 3
      %p138 = scmp.ne.s32.totalorder %s133, %s135
      %p139 = scmp.eq.s32.totalorder %s19, 0
      %p140 = por %p138, %p139
      %p141 = scmp.ne.s32.totalorder %s133, %s135
      %p142 = scmp.eq.s32.totalorder %s24, 3
      %p143 = por %p141, %p142
      %p144 = scmp.ne.s32.totalorder %s135, %s136
      %p145 = scmp.eq.s32.totalorder %s24, 0
      %p146 = por %p144, %p145
      %p147 = scmp.ne.s32.totalorder %s135, %s136
      %p148 = scmp.eq.s32.totalorder %s25, 3
      %p149 = por %p147, %p148
      %p151 = scmp.ne.s32.totalorder %s136, %s150
      %p152 = scmp.eq.s32.totalorder %s25, 0
      %p153 = por %p151, %p152
      %s155 = sadd.s32 %s154, 1
      %p158 = scmp.eq.s32.totalorder %s19, 3
      %p159 = scmp.ne.s32.totalorder %s154, %s156
      %p160 = scmp.eq.s32.totalorder %s19, 0
      %p161 = por %p159, %p160
      %p162 = scmp.ne.s32.totalorder %s154, %s156
      %p163 = scmp.eq.s32.totalorder %s24, 3
      %p164 = por %p162, %p163
      %p165 = scmp.ne.s32.totalorder %s156, %s157
      %p166 = scmp.eq.s32.totalorder %s24, 0
      %p167 = por %p165, %p166
      %p168 = scmp.ne.s32.totalorder %s156, %s157
      %p169 = scmp.eq.s32.totalorder %s25, 3
      %p170 = por %p168, %p169
      %p172 = scmp.ne.s32.totalorder %s157, %s171
      %p173 = scmp.eq.s32.totalorder %s25, 0
      %p174 = por %p172, %p173
      %s175 = ssub.s32 %s26, %s38
      %p176 = scmp.eq.s32.totalorder %s175, 0
      %s178 = sadd.s32 %s177, 1
      %s179 = scalar_select %p176, %s177, %s178
      %p182 = pneg %p176
      %p183 = scmp.eq.s32.totalorder %s19, 3
      %p184 = por %p182, %p183
      %p185 = scmp.ne.s32.totalorder %s177, %s180
      %p186 = scmp.eq.s32.totalorder %s19, 0
      %p187 = por %p185, %p186
      %p188 = scmp.ne.s32.totalorder %s177, %s180
      %p189 = scmp.eq.s32.totalorder %s24, 3
      %p190 = por %p188, %p189
      %p191 = scmp.ne.s32.totalorder %s180, %s181
      %p192 = scmp.eq.s32.totalorder %s24, 0
      %p193 = por %p191, %p192
      %p194 = scmp.ne.s32.totalorder %s180, %s181
      %p195 = scmp.eq.s32.totalorder %s25, 3
      %p196 = por %p194, %p195
      %p198 = scmp.ne.s32.totalorder %s181, %s197
      %p199 = scmp.eq.s32.totalorder %s25, 0
      %p200 = por %p198, %p199
      %p201 = scmp.le.s32.totalorder 1, %s19
      %p202 = scmp.lt.s32.totalorder %s19, 5
      %p203 = pnand %p201, %p202
      %p204 = pneg %p203
      // Predicated region
      $region9: #{tpu_custom_call.1} parent=5 // pred_check
        _
      $region10: #{tpu_custom_call.1} parent=5 // pred_check_branch
        %206 = sbr.rel (%p203) target = $region12
      $region11: #{tpu_custom_call.1} parent=5 // pred_region
        %s207 = ssub.s32 %s19, 1
        // Predicated region
        $region13: #{tpu_custom_call.1} parent=11 // pred_check
          %p208 = pneg %p78
        $region14: #{tpu_custom_call.1} parent=11 // pred_check_branch
          %210 = sbr.rel (%p208) target = $region16
        $region15: #{tpu_custom_call.1} parent=11 // pred_region
          %212 = vsyncadd [#allocation7], 0
          %s213 = sshll.u32 %s1, 4
          %s214 = int_to_ptr.hbm [resolvable:$true] %s213
          %s215 = sshll.u32 [#allocation6], 4
          %s216 = int_to_ptr.vmem [resolvable:$true] %s215
          %221 = dma.hbm_to_vmem [thread:$0]  %s214, 256, %s216, [#allocation7], 64, 64, 4
        $region16: #{tpu_custom_call.1} parent=11 // pred_fallthru
          _
        // Predicated region
        $region17: #{tpu_custom_call.1} parent=11 // pred_check
          %p222 = pneg %p99
        $region18: #{tpu_custom_call.1} parent=11 // pred_check_branch
          %224 = sbr.rel (%p222) target = $region20
        $region19: #{tpu_custom_call.1} parent=11 // pred_region
          _
        $region20: #{tpu_custom_call.1} parent=11 // pred_fallthru
          _
        // Predicated region
        $region21: #{tpu_custom_call.1} parent=11 // pred_check
          %p225 = pneg %p146
        $region22: #{tpu_custom_call.1} parent=11 // pred_check_branch
          %227 = sbr.rel (%p225) target = $region24
        $region23: #{tpu_custom_call.1} parent=11 // pred_region
          _
        $region24: #{tpu_custom_call.1} parent=11 // pred_fallthru
          _
        // Predicated region
        $region25: #{tpu_custom_call.1} parent=11 // pred_check
          %p228 = pneg %p167
        $region26: #{tpu_custom_call.1} parent=11 // pred_check_branch
          %230 = sbr.rel (%p228) target = $region28
        $region27: #{tpu_custom_call.1} parent=11 // pred_region
          %232 = vsyncadd [#allocation7], 0
          %s233 = sshll.u32 %s5, 4
          %s234 = int_to_ptr.hbm [resolvable:$true] %s233
          %s235 = sshll.u32 [#allocation9], 4
          %s236 = int_to_ptr.vmem [resolvable:$true] %s235
          %241 = dma.hbm_to_vmem [thread:$0]  %s234, 256, %s236, [#allocation7], 128, 128, 8
        $region28: #{tpu_custom_call.1} parent=11 // pred_fallthru
          _
      $region12: #{tpu_custom_call.1} parent=5 // pred_fallthru
        _
      %p242 = scmp.lt.s32.totalorder %s19, 4
      // Predicated region
      $region29: #{tpu_custom_call.1} parent=5 // pred_check
        %p243 = pneg %p242
      $region30: #{tpu_custom_call.1} parent=5 // pred_check_branch
        %245 = sbr.rel (%p243) target = $region32
      $region31: #{tpu_custom_call.1} parent=5 // pred_region
        // Predicated region
        $region33: #{tpu_custom_call.1} parent=31 // pred_check
          %p246 = pneg %p51
        $region34: #{tpu_custom_call.1} parent=31 // pred_check_branch
          %248 = sbr.rel (%p246) target = $region36
        $region35: #{tpu_custom_call.1} parent=31 // pred_region
          %s249 = sand.u32 %s19, 1
          %s250 = scalar_lea.sflag [#allocation4], %s249
          %s251 = sand.u32 %s41, 1
          %s252 = smul.addr %s251, 8
          %s253 = scalar_lea.vmem [#allocation3], %s252
          %255 = vsyncadd %s250, 0
          %s256 = smul.addr %s26, 8
          %s257 = scalar_lea.hbm %s0, %s256
          %s259 = sshll.u32 %s257, 4
          %s260 = int_to_ptr.hbm [resolvable:$true] %s259
          %s261 = sshll.u32 %s253, 4
          %s262 = int_to_ptr.vmem [resolvable:$true] %s261
          %264 = dma.hbm_to_vmem [thread:$0]  %s260, 128, %s262, %s250
        $region36: #{tpu_custom_call.1} parent=31 // pred_fallthru
          _
        // Predicated region
        $region37: #{tpu_custom_call.1} parent=31 // pred_check
          %p265 = pneg %p119
        $region38: #{tpu_custom_call.1} parent=31 // pred_check_branch
          %267 = sbr.rel (%p265) target = $region40
        $region39: #{tpu_custom_call.1} parent=31 // pred_region
          %s268 = sand.u32 %s19, 1
          %s269 = scalar_lea.sflag [#allocation4], %s268
          %s270 = sand.u32 %s109, 1
          %s271 = smul.addr %s270, 8
          %s272 = scalar_lea.vmem [#allocation8], %s271
          %274 = vsyncadd %s269, 0
          %s275 = smul.addr %s27, 2
          %s276 = smul.addr %s275, 4
          %s277 = scalar_lea.hbm %s3, %s276
          %s278 = sshll.u32 %s277, 4
          %s279 = int_to_ptr.hbm [resolvable:$true] %s278
          %s280 = sshll.u32 %s272, 4
          %s281 = int_to_ptr.vmem [resolvable:$true] %s280
          %286 = dma.hbm_to_vmem [thread:$0]  %s279, 128, %s281, %s269, 64, 64, 4
        $region40: #{tpu_custom_call.1} parent=31 // pred_fallthru
          _
      $region32: #{tpu_custom_call.1} parent=5 // pred_fallthru
        _
      %p287 = scmp.le.s32.totalorder 1, %s19
      %p288 = scmp.lt.s32.totalorder %s19, 5
      %p289 = pnand %p287, %p288
      %p290 = pneg %p289
      // Predicated region
      $region41: #{tpu_custom_call.1} parent=5 // pred_check
        _
      $region42: #{tpu_custom_call.1} parent=5 // pred_check_branch
        %292 = sbr.rel (%p289) target = $region44
      $region43: #{tpu_custom_call.1} parent=5 // pred_region
        %s293 = ssub.s32 %s19, 1
        %s294 = sand.u32 %s24, 1
        %s295 = scalar_lea.sflag [#allocation4], %s294
        %s296 = sand.u32 %s44, 1
        %s297 = smul.addr %s296, 8
        %s298 = scalar_lea.vmem [#allocation3], %s297
        // Predicated region
        $region45: #{tpu_custom_call.1} parent=43 // pred_check
          %p299 = pneg %p57
        $region46: #{tpu_custom_call.1} parent=43 // pred_check_branch
          %301 = sbr.rel (%p299) target = $region48
        $region47: #{tpu_custom_call.1} parent=43 // pred_region
          %303 = dma.done %s295, 128
        $region48: #{tpu_custom_call.1} parent=43 // pred_fallthru
          _
        // Predicated region
        $region49: #{tpu_custom_call.1} parent=43 // pred_check
          %p304 = pneg %p78
        $region50: #{tpu_custom_call.1} parent=43 // pred_check_branch
          %306 = sbr.rel (%p304) target = $region52
        $region51: #{tpu_custom_call.1} parent=43 // pred_region
          %308 = dma.done [#allocation7], 256
        $region52: #{tpu_custom_call.1} parent=43 // pred_fallthru
          _
        %s309 = sand.u32 %s24, 1
        %s310 = scalar_lea.sflag [#allocation4], %s309
        %s311 = sand.u32 %s112, 1
        %s312 = smul.addr %s311, 8
        %s313 = scalar_lea.vmem [#allocation8], %s312
        // Predicated region
        $region53: #{tpu_custom_call.1} parent=43 // pred_check
          %p314 = pneg %p125
        $region54: #{tpu_custom_call.1} parent=43 // pred_check_branch
          %316 = sbr.rel (%p314) target = $region56
        $region55: #{tpu_custom_call.1} parent=43 // pred_region
          %318 = dma.done %s310, 128
        $region56: #{tpu_custom_call.1} parent=43 // pred_fallthru
          _
        // Predicated region
        $region57: #{tpu_custom_call.1} parent=43 // pred_check
          %p319 = pneg %p167
        $region58: #{tpu_custom_call.1} parent=43 // pred_check_branch
          %321 = sbr.rel (%p319) target = $region60
        $region59: #{tpu_custom_call.1} parent=43 // pred_region
          %323 = dma.done [#allocation7], 256
        $region60: #{tpu_custom_call.1} parent=43 // pred_fallthru
          _
        %s324 = sand.u32 %s24, 1
        %s325 = scalar_lea.sflag [#allocation4], %s324
        %s326 = sand.u32 %s44, 1
        %s327 = smul.addr %s326, 8
        %s328 = scalar_lea.vmem [#allocation3], %s327
        %p329 = pneg %p57
        %p330 = pneg %p54
        %p331 = pneg %p78
        %p332 = pneg %p75
        %p333 = pneg %p99
        %p334 = pneg %p96
        %s335 = sand.u32 %s24, 1
        %s336 = scalar_lea.sflag [#allocation4], %s335
        %s337 = sand.u32 %s112, 1
        %s338 = smul.addr %s337, 8
        %s339 = scalar_lea.vmem [#allocation8], %s338
        %p340 = pneg %p125
        %p341 = pneg %p122
        %p342 = pneg %p146
        %p343 = pneg %p143
        %p344 = pneg %p167
        %p345 = pneg %p164
        %p346 = pneg %p193
        %p347 = pneg %p190
        %s348 = sand.u32 %s180, 1
        %s349 = scalar_lea.sflag [#allocation5], %s348
        %s350 = sand.u32 %s180, 1
        %s351 = smul.addr %s350, 8
        %s352 = scalar_lea.vmem [#allocation10], %s351
        %p354 = scmp.eq.s32.totalorder %s29, 0
        // Predicated region
        $region61: #{tpu_custom_call.1} parent=43 // pred_check
          %p355 = pneg %p354
        $region62: #{tpu_custom_call.1} parent=43 // pred_check_branch
          %357 = sbr.rel (%p355) target = $region64
        $region63: #{tpu_custom_call.1} parent=43 // pred_region
          %v358 = vld [vmem:[%s298] sm:$0xff]
          %v359 = vpack.c.bf16 %v358, %v358
          %v360 = vld [vmem:[#allocation6] sm:$0xf]
          %v361 = vld [vmem:[#allocation6 + $0x4] sm:$0xf]
          %v362 = vld [vmem:[#allocation6 + $0x8] sm:$0xf]
          %v363 = vld [vmem:[#allocation6 + $0xc] sm:$0xf]
          %v364 = vld [vmem:[%s2] sm:$0x1]
          %v366 = vperm.slane %v364, 0
          %v372 = vunpack.c.l.b16 %v360
          %v373 = vunpack.c.l.b16 %v361
          %v374 = vunpack.c.l.b16 %v362
          %v375 = vunpack.c.l.b16 %v363
          %v376 = vpack.c.b16 %v373, %v372
          %v377 = vpack.c.b16 %v375, %v374
          %vm380 = vcmask 261120
          %v382 = vsel %vm380, %v359, 0
          %384 = vmatpush.bf16.msra.mxu0 0
          %385 = vmatpush.bf16.msra.mxu0 0
          %386 = vmatpush.bf16.msra.mxu0 0
          %387 = vmatpush.bf16.msra.mxu0 0
          %388 = vmatpush.bf16.msra.mxu0 0
          %389 = vmatpush.bf16.msra.mxu0 0
          %390 = vmatpush.bf16.msra.mxu0 %v377
          %391 = vmatpush.bf16.msra.mxu0 %v376
          %392 = vmatmul.bf16.gmra.mxu0 %v382
          %v393 = vpop.f32.mrf.mxu0
          %v394 = vadd.f32 %v366, %v393
          %v395 = vpop.f32.mrf.mxu0
          %396 = vdwg.mxu0
          %vm397 = vcmask 392192
          %398 = vst.msk [vmem:[#allocation2] sm:$0xff] %vm397, %v394
          %400 = vrot.lane.b32.xlu0 %v394, 80
          %v401 = vpop.permute.xlu0 %400
          %s403 = scalar_lea.vmem [#allocation2], 8
          %404 = vst.msk [vmem:[%s403] sm:$0xff] %vm397, %v401
        $region64: #{tpu_custom_call.1} parent=43 // pred_fallthru
          _
        %s405 = smul.u32 %s29, 8
        %s406 = scalar_lea.vmem [#allocation2], %s405
        %v407 = vld [vmem:[%s406] sm:$0xff]
        %v408 = vld [vmem:[#allocation9] sm:$0xff]
        %s409 = scalar_lea.vmem [#allocation9], 8
        %v410 = vld [vmem:[%s409] sm:$0xff]
        %v411 = vmul.f32 %v407, %v408
        %vm412 = vcmask 1047680
        %413 = vrot.lane.b32.xlu0 %v407, 16
        %v414 = vpop.permute.xlu0 %413
        %v415 = vsel %vm412, %v414, %v407
        %416 = vrot.lane.b32.xlu0 %v415, 16
        %v417 = vpop.permute.xlu0 %416
        %v418 = vsel %vm412, %v417, %v407
        %420 = vrot.lane.b32.xlu0 %v410, 8
        %v421 = vpop.permute.xlu0 %420
        %v423 = vmul.f32 %v418, %v421
        %425 = vrot.lane.b32.xlu0 %v423, 120
        %v426 = vpop.permute.xlu0 %425
        %v428 = vadd.f32 %v411, %v426
        %430 = vrot.lane.b32.xlu0 %v408, 16
        %v431 = vpop.permute.xlu0 %430
        %v433 = vmul.f32 %v407, %v431
        %435 = vrot.lane.b32.xlu0 %v407, 112
        %v436 = vpop.permute.xlu0 %435
        %438 = vrot.lane.b32.xlu0 %v436, 16
        %v439 = vpop.permute.xlu0 %438
        %v440 = vsel %vm412, %v439, %v436
        %441 = vrot.lane.b32.xlu0 %v440, 16
        %v442 = vpop.permute.xlu0 %441
        %v443 = vsel %vm412, %v442, %v436
        %v444 = vmul.f32 %v443, %v421
        %446 = vrot.lane.b32.xlu0 %v444, 8
        %v447 = vpop.permute.xlu0 %446
        %v449 = vadd.f32 %v433, %v447
        %v450 = vpack.c.bf16 %v428, %v428
        %v451 = vpack.c.bf16 %v449, %v449
        %453 = vrot.lane.b32.xlu0 %v451, 112
        %v454 = vpop.permute.xlu0 %453
        %vm455 = vcmask 130048
        %v457 = vsel %vm455, %v450, 0
        %v460 = vsel %vm455, %v454, 0
        %462 = vmatpush.bf16.xpose.msra.mxu0 0
        %463 = vmatpush.bf16.xpose.msra.mxu0 0
        %464 = vmatpush.bf16.xpose.msra.mxu0 0
        %465 = vmatpush.bf16.xpose.msra.mxu0 0
        %466 = vmatpush.bf16.xpose.msra.mxu0 0
        %467 = vmatpush.bf16.xpose.msra.mxu0 0
        %468 = vmatpush.bf16.xpose.msra.mxu0 0
        %469 = vmatpush.bf16.xpose.msra.mxu0 %v460
        %470 = vmatmul.bf16.gmra.mxu0 %v457
        %v471 = vpop.f32.mrf.mxu0
        %v472 = vadd.f32 0.0, %v471
        %v473 = vpop.f32.mrf.mxu0
        %474 = vdwg.mxu0
        %vm475 = vcmask 64512
        %v476 = vsel %vm475, %v472, -inf
        %477 = vmax.xlane.f32.xlu0 %v476
        %v478 = vpop.xlane.xlu0 %477
        %v479 = vsub.f32 %v472, %v478
        %v480 = vmul.f32 %v479, 1.442695
        %v481 = vpow.pop %v480
        %v482 = vsel %vm475, %v481, 0.0
        %483 = vadd.xlane.f32.xlu0 %v482
        %v484 = vpop.xlane.xlu0 %483
        %v485 = vrcp.pop %v484
        %v486 = vmul.f32 %v481, %v485
        %v487 = vpack.c.bf16 %v486, %v486
        %v488 = vpack.c.bf16 %v407, %v407
        %490 = vrot.lane.b32.xlu0 %v488, 96
        %v491 = vpop.permute.xlu0 %490
        %v493 = vsel %vm475, %v487, 0
        %vm495 = vcmask 1043456
        %v497 = vsel %vm495, %v491, 0
        %499 = vmatpush.bf16.msra.mxu0 0
        %500 = vmatpush.bf16.msra.mxu0 0
        %501 = vmatpush.bf16.msra.mxu0 0
        %502 = vmatpush.bf16.msra.mxu0 0
        %503 = vmatpush.bf16.msra.mxu0 0
        %504 = vmatpush.bf16.msra.mxu0 0
        %505 = vmatpush.bf16.msra.mxu0 0
        %506 = vmatpush.bf16.msra.mxu0 %v497
        %507 = vmatmul.bf16.gmra.mxu0 %v493
        %v508 = vpop.f32.mrf.mxu0
        %v509 = vadd.f32 0.0, %v508
        %v510 = vpop.f32.mrf.mxu0
        %511 = vdwg.mxu0
        %v512 = vpack.c.bf16 %v509, %v509
        %v513 = vld [vmem:[%s313] sm:$0xf]
        %v514 = vld [vmem:[%s313 + $0x4] sm:$0xf]
        %v517 = vunpack.c.l.b16 %v513
        %v518 = vunpack.c.l.b16 %v514
        %v519 = vpack.c.b16 %v518, %v517
        %v522 = vsel %vm455, %v512, 0
        %524 = vmatpush.bf16.msra.mxu0 0
        %525 = vmatpush.bf16.msra.mxu0 0
        %526 = vmatpush.bf16.msra.mxu0 0
        %527 = vmatpush.bf16.msra.mxu0 0
        %528 = vmatpush.bf16.msra.mxu0 0
        %529 = vmatpush.bf16.msra.mxu0 0
        %530 = vmatpush.bf16.msra.mxu0 0
        %531 = vmatpush.bf16.msra.mxu0 %v519
        %532 = vmatmul.bf16.gmra.mxu0 %v522
        %v533 = vpop.f32.mrf.mxu0
        %v534 = vadd.f32 0.0, %v533
        %v535 = vpop.f32.mrf.mxu0
        %536 = vdwg.mxu0
        // Predicated region
        $region65: #{tpu_custom_call.1} parent=43 // pred_check
          %p537 = pneg %p354
        $region66: #{tpu_custom_call.1} parent=43 // pred_check_branch
          %539 = sbr.rel (%p537) target = $region68
        $region67: #{tpu_custom_call.1} parent=43 // pred_region
          %v540 = vld [vmem:[%s4] sm:$0x1]
          %v542 = vperm.slane %v540, 0
          %v544 = vadd.f32 %v534, %v542
          %vm545 = vcmask 261120
          %546 = vst.msk [vmem:[%s352] sm:$0xff] %vm545, %v544
        $region68: #{tpu_custom_call.1} parent=43 // pred_fallthru
          _
        %p547 = scmp.gt.s32.totalorder %s29, 0
        // Predicated region
        $region69: #{tpu_custom_call.1} parent=43 // pred_check
          %p548 = pneg %p547
        $region70: #{tpu_custom_call.1} parent=43 // pred_check_branch
          %550 = sbr.rel (%p548) target = $region72
        $region71: #{tpu_custom_call.1} parent=43 // pred_region
          %v551 = vld [vmem:[%s352] sm:$0xff]
          %v552 = vadd.f32 %v551, %v534
          %vm553 = vcmask 261120
          %554 = vst.msk [vmem:[%s352] sm:$0xff] %vm553, %v552
        $region72: #{tpu_custom_call.1} parent=43 // pred_fallthru
          _
        %s555 = sand.u32 %s180, 1
        %s556 = scalar_lea.sflag [#allocation5], %s555
        %s557 = sand.u32 %s180, 1
        %s558 = smul.addr %s557, 8
        %s559 = scalar_lea.vmem [#allocation10], %s558
        // Predicated region
        $region73: #{tpu_custom_call.1} parent=43 // pred_check
          %p560 = pneg %p190
        $region74: #{tpu_custom_call.1} parent=43 // pred_check_branch
          %562 = sbr.rel (%p560) target = $region76
        $region75: #{tpu_custom_call.1} parent=43 // pred_region
          %564 = vsyncadd %s556, 0
          %s565 = smul.addr %s28, 8
          %s566 = scalar_lea.hbm %s6, %s565
          %s568 = sshll.u32 %s559, 4
          %s569 = int_to_ptr.vmem [resolvable:$true] %s568
          %s570 = sshll.u32 %s566, 4
          %s571 = int_to_ptr.hbm [resolvable:$true] %s570
          %573 = dma.vmem_to_hbm [thread:$0]  %s569, 128, %s571, %s556
        $region76: #{tpu_custom_call.1} parent=43 // pred_fallthru
          _
      $region44: #{tpu_custom_call.1} parent=5 // pred_fallthru
        _
      %p574 = scmp.le.s32.totalorder 2, %s19
      // Predicated region
      $region77: #{tpu_custom_call.1} parent=5 // pred_check
        %p575 = pneg %p574
      $region78: #{tpu_custom_call.1} parent=5 // pred_check_branch
        %577 = sbr.rel (%p575) target = $region80
      $region79: #{tpu_custom_call.1} parent=5 // pred_region
        %s578 = ssub.s32 %s19, 2
        // Predicated region
        $region81: #{tpu_custom_call.1} parent=79 // pred_check
          %p579 = pneg %p196
        $region82: #{tpu_custom_call.1} parent=79 // pred_check_branch
          %581 = sbr.rel (%p579) target = $region84
        $region83: #{tpu_custom_call.1} parent=79 // pred_region
          %s582 = sand.u32 %s181, 1
          %s583 = scalar_lea.sflag [#allocation5], %s582
          %s584 = sand.u32 %s181, 1
          %s585 = smul.addr %s584, 8
          %s586 = scalar_lea.vmem [#allocation10], %s585
          %588 = dma.done %s583, 128
        $region84: #{tpu_custom_call.1} parent=79 // pred_fallthru
          _
      $region80: #{tpu_custom_call.1} parent=5 // pred_fallthru
        _
    $region6: #{tpu_custom_call.1} parent=1 // loop_footer
      %s23 = sadd.s32 1, %s19
    $region7: #{tpu_custom_call.1} parent=1 // loop_footer_branch
      %18 = sbr.rel target = $region3
    $region8: #{tpu_custom_call.1} parent=1 // loop_exit
      _
    %589 = vsyncpa [#allocation4], 1
    %s590 = scalar_lea.sflag [#allocation4], 1
    %591 = vsyncpa %s590, 1
    %592 = vsyncpa [#allocation7], 1
    %593 = vsyncpa [#allocation5], 1
    %s594 = scalar_lea.sflag [#allocation5], 1
    %595 = vsyncpa %s594, 1

</llo_original>
